<compile_context>
chip_gen: v7x
topology: tpu7x:2x2x1
jax: 0.10.0
libtpu: 0.0.40
codegen_flags: <defaults>
</compile_context>

<pallas_src>
import math

import jax
import jax.numpy as jnp
from jax.experimental import pallas as pl
from jax.experimental.pallas import tpu as pltpu


def _pe_add_kernel(x_ref, pe_ref, out_ref):
    # x_ref : (bb, ts, D)  current (batch-block, seq-tile) block of the input
    # pe_ref: (bb, 1, D)   positional-encoding rows for this batch block
    # out   : (bb, ts, D)
    # Broadcast add over the seq-tile; dropout is identity at inference.
    out_ref[...] = x_ref[...] + pe_ref[...]


_BLOCK_BYTES_TARGET = 6 << 20    # ~6 MiB per input block (per-step DMA size)
_VMEM_LIMIT_BYTES = 48 << 20     # explicit scoped-VMEM limit (safe on v5e/v6e/v7x)


def _sublane_multiple(dtype):
    itemsize = jnp.dtype(dtype).itemsize
    if itemsize >= 4:
        return 8
    if itemsize == 2:
        return 16
    return 32


def _pick_tiles(B, S, D, dtype):
    """Choose (bb, ts): batch-block and seq-tile sizes.

    Targets ~_BLOCK_BYTES_TARGET per input block so each grid step moves
    multiple MiB (amortizing the fixed per-step pipeline cost); the
    double-buffered in+out footprint is ~4x that, well inside the explicit
    VMEM limit on every TPU generation."""
    itemsize = jnp.dtype(dtype).itemsize
    sub = _sublane_multiple(dtype)
    seq_row_bytes = D * itemsize               # one (1, 1, D) row
    batch_row_bytes = S * seq_row_bytes        # one full (1, S, D) slab

    if batch_row_bytes <= _BLOCK_BYTES_TARGET:
        # Full sequences fit in a block: block over batch (fewer, fatter steps).
        ts = S
        bb = max(1, _BLOCK_BYTES_TARGET // batch_row_bytes)
        if B > 1:
            # Keep >= 2 batch blocks so both v7x TensorCores get work.
            bb = min(bb, pl.cdiv(B, 2))
        bb = min(bb, B)
    else:
        # One batch row per block; tile the sequence dimension.
        bb = 1
        ts = _BLOCK_BYTES_TARGET // seq_row_bytes
        ts = max(sub, (ts // sub) * sub)       # dtype-aware sublane rounding
        ts = min(ts, S)                        # ts==S (full dim) is always legal
    return bb, ts


def positional_encoding_forward(x, pe):
    """x: (B, S, D); pe: (max_len, 1, D) buffer (as registered by the module)."""
    B, S, D = x.shape
    assert pe.ndim == 3 and pe.shape[1] == 1 and pe.shape[2] == D
    assert pe.shape[0] >= B, "max_len must be >= batch size (module slices pe[:B])"

    bb, ts = _pick_tiles(B, S, D, x.dtype)
    grid = (pl.cdiv(B, bb), pl.cdiv(S, ts))    # ragged last blocks handled by Pallas

    return pl.pallas_call(
        _pe_add_kernel,
        out_shape=jax.ShapeDtypeStruct((B, S, D), x.dtype),
        grid_spec=pltpu.PrefetchScalarGridSpec(
            num_scalar_prefetch=0,
            grid=grid,
            in_specs=[
                # input tile: bb batch rows, ts seq rows, full (lane-dense) D
                pl.BlockSpec((bb, ts, D), lambda b, s: (b, s, 0)),
                # pe rows for this batch block, taken directly from the full
                # (max_len, 1, D) buffer; block index is constant across seq
                # tiles so it stays resident.
                pl.BlockSpec((bb, 1, D), lambda b, s: (b, 0, 0)),
            ],
            out_specs=pl.BlockSpec((bb, ts, D), lambda b, s: (b, s, 0)),
        ),
        compiler_params=pltpu.CompilerParams(
            # elementwise over both grid axes -> both shardable across TCs
            dimension_semantics=("parallel", "parallel"),
            vmem_limit_bytes=_VMEM_LIMIT_BYTES),
    )(x, pe)


if __name__ == "__main__":
    # Small, deterministic shapes consistent with the module's forward.
    B, S, D = 4, 16, 128               # batch, seq_len, d_model (lane-friendly)
    max_len = 64

    key = jax.random.PRNGKey(0)
    x = jax.random.normal(key, (B, S, D), dtype=jnp.float32)

    # Build the `pe` buffer exactly as the PyTorch __init__ does.
    position = jnp.arange(max_len, dtype=jnp.float32)[:, None]            # (max_len, 1)
    div_term = jnp.exp(jnp.arange(0, D, 2, dtype=jnp.float32)
                       * (-math.log(10000.0) / D))                        # (D//2,)
    pe = jnp.zeros((max_len, 1, D), jnp.float32)
    pe = pe.at[:, 0, 0::2].set(jnp.sin(position * div_term))
    pe = pe.at[:, 0, 1::2].set(jnp.cos(position * div_term))

    out = jax.block_until_ready(positional_encoding_forward(x, pe))

    # Pure-JAX reference of the PyTorch forward (eval mode: dropout = identity).
    ref = x + pe[:B]                   # (B,1,D) broadcast over the seq dim

    assert out.shape == (B, S, D)
    assert jnp.allclose(out, ref, atol=1e-6, rtol=1e-6), (out, ref)
    print("KERNEL_OK")
</pallas_src>

<mosaic_0001>
module attributes {stable_mosaic.version = 11 : i64} {
  func.func @_pe_add_kernel(%arg0: i32, %arg1: i32, %arg2: memref<2x16x128xf32, #tpu.memory_space<vmem>>, %arg3: memref<2x1x128xf32, #tpu.memory_space<vmem>>, %arg4: memref<2x16x128xf32, #tpu.memory_space<vmem>>) attributes {dimension_semantics = [#tpu.dimension_semantics<parallel>, #tpu.dimension_semantics<parallel>], iteration_bounds = array<i64: 2, 1>, scalar_prefetch = 0 : i64, scratch_operands = 0 : i64, tpu.core_type = #tpu.core_type<tc>, window_params = [{transform_indices = @transform_0, window_bounds = array<i64: 2, 16, 128>}, {transform_indices = @transform_1, window_bounds = array<i64: 2, 1, 128>}, {transform_indices = @transform_2, window_bounds = array<i64: 2, 16, 128>}]} {
    %c0 = arith.constant 0 : index
    %c0_0 = arith.constant 0 : index
    %c0_1 = arith.constant 0 : index
    %0 = vector.load %arg2[%c0, %c0_0, %c0_1] : memref<2x16x128xf32, #tpu.memory_space<vmem>>, vector<2x16x128xf32>
    %c0_2 = arith.constant 0 : index
    %c0_3 = arith.constant 0 : index
    %c0_4 = arith.constant 0 : index
    %1 = vector.load %arg3[%c0_2, %c0_3, %c0_4] : memref<2x1x128xf32, #tpu.memory_space<vmem>>, vector<2x1x128xf32>
    %2 = vector.broadcast %1 : vector<2x1x128xf32> to vector<2x16x128xf32>
    %3 = arith.addf %0, %2 : vector<2x16x128xf32>
    %c0_5 = arith.constant 0 : index
    %c0_6 = arith.constant 0 : index
    %c0_7 = arith.constant 0 : index
    %4 = vector.load %arg4[%c0_5, %c0_6, %c0_7] : memref<2x16x128xf32, #tpu.memory_space<vmem>>, vector<2x16x128xf32>
    tpu.vector_store %arg4[%c0_5, %c0_6, %c0_7], %3 {strides = array<i32>} : memref<2x16x128xf32, #tpu.memory_space<vmem>>, vector<2x16x128xf32>,
    return
  }
  func.func @transform_0(%arg0: i32, %arg1: i32) -> (i32, i32, i32) {
    %c0_i32 = arith.constant 0 : i32
    %c0_i32_0 = arith.constant 0 : i32
    return %arg0, %arg1, %c0_i32 : i32, i32, i32
  }
  func.func @transform_1(%arg0: i32, %arg1: i32) -> (i32, i32, i32) {
    %c0_i32 = arith.constant 0 : i32
    %c0_i32_0 = arith.constant 0 : i32
    %c0_i32_1 = arith.constant 0 : i32
    return %arg0, %c0_i32, %c0_i32_0 : i32, i32, i32
  }
  func.func @transform_2(%arg0: i32, %arg1: i32) -> (i32, i32, i32) {
    %c0_i32 = arith.constant 0 : i32
    %c0_i32_0 = arith.constant 0 : i32
    return %arg0, %arg1, %c0_i32 : i32, i32, i32
  }
}

</mosaic_0001>

<llo_original>
// kernel: tpu_custom_call.1
$region0: #{tpu_custom_call.1}
  #allocation0 [shape = 'u32[]', space=smem, size = 0x4, offset = 0x4, fixed_abs, tag = 'smem constant byte address 0x4 - core index']
  #allocation1 [shape = 'u32[144,128]{1,0:T(1,128)}', space=vmem, size = 0x12000, scoped, tag = 'internal scratch']
  %s0 = inlined_call_operand.hbm [shape: f32[4,16,128], index: 0, kind: input, shape index: {}]
  %s1 = inlined_call_operand.hbm [shape: f32[64,1,128], index: 1, kind: input, shape index: {}]
  %s2 = inlined_call_operand.hbm [shape: f32[4,16,128], index: 2, kind: output, shape index: {}]
  %s3 = sld [smem:[#allocation0]]
  $region49: #{tpu_custom_call.1} parent=0
    _
  %s5 = ssub.s32 1, %s3
  %s6 = scalar_select 0, %s5, %s3
  $region1: #{tpu_custom_call.1} parent=0
    #allocation2 [shape = 'u8[32768]{0}', space=vmem, size = 0x8000, scoped, tag = 'input window, operand 0']
    #allocation3 [shape = 's32[2]{0}', space=sflag, size = 0x8, scoped, tag = 'scoped memory for tpu_custom_call.1']
    #allocation4 [shape = 's32[2]{0}', space=sflag, size = 0x8, scoped, tag = 'scoped memory for tpu_custom_call.1']
    #allocation5 [shape = 'u8[2048]{0}', space=vmem, size = 0x800, scoped, tag = 'input window, operand 1']
    #allocation6 [shape = 's32[2]{0}', space=sflag, size = 0x8, scoped, tag = 'scoped memory for tpu_custom_call.1']
    #allocation7 [shape = 'u8[32768]{0}', space=vmem, size = 0x8000, scoped, tag = 'output window, operand 0']
    %7 = vsyncpa [#allocation3], 0
    %s8 = scalar_lea.sflag [#allocation3], 1
    %9 = vsyncpa %s8, 0
    %10 = vsyncpa [#allocation6], 0
    %s11 = scalar_lea.sflag [#allocation6], 1
    %12 = vsyncpa %s11, 0
    %13 = vsyncpa [#allocation4], 0
    %s14 = scalar_lea.sflag [#allocation4], 1
    %15 = vsyncpa %s14, 0
    loop: start=0, step=1, limit=4
    $region2: #{tpu_custom_call.1} parent=1 // loop_pre_header
      _
    $region3: #{tpu_custom_call.1} parent=1 // loop_header
      %s17 = sphi 0, %s21
      %p18 = scmp.ge.s32.totalorder %s17, 4
      %s24 = sphi 0, %s36
      %s25 = sphi 0, %s32
      %s26 = sphi 0, %s24
      %s27 = sphi 0, %s25
      %s28 = sphi 0, %s26
      %s29 = sphi 0, %s27
      %s41 = sphi 0, %s43
      %s44 = sphi 0, %s41
      %s45 = sphi 0, %s44
      %s61 = sphi 0, %s45
      %s67 = sphi 0, %s69
      %s70 = sphi 0, %s67
      %s71 = sphi 0, %s70
      %s87 = sphi 0, %s71
      %s95 = sphi 0, %s97
      %s98 = sphi 0, %s95
      %s99 = sphi 0, %s98
      %s115 = sphi 0, %s99
    $region4: #{tpu_custom_call.1} parent=1 // loop_header_branch
      %20 = sbr.rel (%p18) target = $region8
    $region5: #{tpu_custom_call.1} parent=1 // loop_body
      %s22 = ssub.s32 %s17, 1
      %s23 = ssub.s32 %s17, 2
      %s30 = sadd.s32 1, %s25
      %p31 = scmp.ge.s32.totalorder %s30, 1
      %s32 = scalar_select %p31, 0, %s30
      %s33 = sadd.s32 1, %s24
      %s34 = scalar_select %p31, %s33, %s24
      %p35 = scmp.ge.s32.totalorder %s34, 2
      %s36 = scalar_select %p35, 0, %s34
      %s37 = ssub.s32 %s24, %s36
      %s38 = ssub.s32 %s25, %s32
      %s39 = sor.u32 %s37, %s38
      %p40 = scmp.eq.s32.totalorder %s39, 0
      %s42 = sadd.s32 %s41, 1
      %s43 = scalar_select %p40, %s41, %s42
      %p46 = pneg %p40
      %p47 = scmp.eq.s32.totalorder %s17, 1
      %p48 = por %p46, %p47
      %p49 = scmp.ne.s32.totalorder %s41, %s44
      %p50 = scmp.eq.s32.totalorder %s17, 0
      %p51 = por %p49, %p50
      %p52 = scmp.ne.s32.totalorder %s41, %s44
      %p53 = scmp.eq.s32.totalorder %s22, 1
      %p54 = por %p52, %p53
      %p55 = scmp.ne.s32.totalorder %s44, %s45
      %p56 = scmp.eq.s32.totalorder %s22, 0
      %p57 = por %p55, %p56
      %p58 = scmp.ne.s32.totalorder %s44, %s45
      %p59 = scmp.eq.s32.totalorder %s23, 1
      %p60 = por %p58, %p59
      %p62 = scmp.ne.s32.totalorder %s45, %s61
      %p63 = scmp.eq.s32.totalorder %s23, 0
      %p64 = por %p62, %p63
      %s65 = ssub.s32 %s24, %s36
      %p66 = scmp.eq.s32.totalorder %s65, 0
      %s68 = sadd.s32 %s67, 1
      %s69 = scalar_select %p66, %s67, %s68
      %p72 = pneg %p66
      %p73 = scmp.eq.s32.totalorder %s17, 1
      %p74 = por %p72, %p73
      %p75 = scmp.ne.s32.totalorder %s67, %s70
      %p76 = scmp.eq.s32.totalorder %s17, 0
      %p77 = por %p75, %p76
      %p78 = scmp.ne.s32.totalorder %s67, %s70
      %p79 = scmp.eq.s32.totalorder %s22, 1
      %p80 = por %p78, %p79
      %p81 = scmp.ne.s32.totalorder %s70, %s71
      %p82 = scmp.eq.s32.totalorder %s22, 0
      %p83 = por %p81, %p82
      %p84 = scmp.ne.s32.totalorder %s70, %s71
      %p85 = scmp.eq.s32.totalorder %s23, 1
      %p86 = por %p84, %p85
      %p88 = scmp.ne.s32.totalorder %s71, %s87
      %p89 = scmp.eq.s32.totalorder %s23, 0
      %p90 = por %p88, %p89
      %s91 = ssub.s32 %s24, %s36
      %s92 = ssub.s32 %s25, %s32
      %s93 = sor.u32 %s91, %s92
      %p94 = scmp.eq.s32.totalorder %s93, 0
      %s96 = sadd.s32 %s95, 1
      %s97 = scalar_select %p94, %s95, %s96
      %p100 = pneg %p94
      %p101 = scmp.eq.s32.totalorder %s17, 1
      %p102 = por %p100, %p101
      %p103 = scmp.ne.s32.totalorder %s95, %s98
      %p104 = scmp.eq.s32.totalorder %s17, 0
      %p105 = por %p103, %p104
      %p106 = scmp.ne.s32.totalorder %s95, %s98
      %p107 = scmp.eq.s32.totalorder %s22, 1
      %p108 = por %p106, %p107
      %p109 = scmp.ne.s32.totalorder %s98, %s99
      %p110 = scmp.eq.s32.totalorder %s22, 0
      %p111 = por %p109, %p110
      %p112 = scmp.ne.s32.totalorder %s98, %s99
      %p113 = scmp.eq.s32.totalorder %s23, 1
      %p114 = por %p112, %p113
      %p116 = scmp.ne.s32.totalorder %s99, %s115
      %p117 = scmp.eq.s32.totalorder %s23, 0
      %p118 = por %p116, %p117
      %p119 = scmp.le.s32.totalorder 1, %s17
      %p120 = scmp.lt.s32.totalorder %s17, 3
      %p121 = pnand %p119, %p120
      %p122 = pneg %p121
      // Predicated region
      $region9: #{tpu_custom_call.1} parent=5 // pred_check
        _
      $region10: #{tpu_custom_call.1} parent=5 // pred_check_branch
        %124 = sbr.rel (%p121) target = $region12
      $region11: #{tpu_custom_call.1} parent=5 // pred_region
        %s125 = ssub.s32 %s17, 1
      $region12: #{tpu_custom_call.1} parent=5 // pred_fallthru
        _
      %p126 = scmp.lt.s32.totalorder %s17, 2
      // Predicated region
      $region13: #{tpu_custom_call.1} parent=5 // pred_check
        %p127 = pneg %p126
      $region14: #{tpu_custom_call.1} parent=5 // pred_check_branch
        %129 = sbr.rel (%p127) target = $region16
      $region15: #{tpu_custom_call.1} parent=5 // pred_region
        // Predicated region
        $region17: #{tpu_custom_call.1} parent=15 // pred_check
          %p130 = pneg %p51
        $region18: #{tpu_custom_call.1} parent=15 // pred_check_branch
          %132 = sbr.rel (%p130) target = $region20
        $region19: #{tpu_custom_call.1} parent=15 // pred_region
          %s133 = sand.u32 %s41, 1
          %s134 = scalar_lea.sflag [#allocation3], %s133
          %s135 = sand.u32 %s41, 1
          %s136 = smul.addr %s135, 32
          %s137 = scalar_lea.vmem [#allocation2], %s136
          %s138 = smul.u32 2, %s24
          %s139 = smul.u32 2, %s25
          %s141 = ssub.s32 512, 512
          %142 = vsyncadd %s134, %s141
          %s143 = smul.addr %s138, 2
          %s144 = sadd.s32 %s139, %s143
          %s145 = smul.addr %s144, 128
          %s146 = scalar_lea.hbm %s0, %s145
          %s147 = sshll.u32 %s137, 4
          %s148 = int_to_ptr.vmem [resolvable:$true] %s147
          %153 = dma.hbm_to_vmem [thread:$0]  %s146, 512, %s148, %s134, 128, 128, 8
        $region20: #{tpu_custom_call.1} parent=15 // pred_fallthru
          _
        // Predicated region
        $region21: #{tpu_custom_call.1} parent=15 // pred_check
          %p154 = pneg %p77
        $region22: #{tpu_custom_call.1} parent=15 // pred_check_branch
          %156 = sbr.rel (%p154) target = $region24
        $region23: #{tpu_custom_call.1} parent=15 // pred_region
          %s157 = sand.u32 %s67, 1
          %s158 = scalar_lea.sflag [#allocation6], %s157
          %s159 = sand.u32 %s67, 1
          %s160 = smul.addr %s159, 2
          %s161 = scalar_lea.vmem [#allocation5], %s160
          %s162 = smul.u32 2, %s24
          %s164 = ssub.s32 32, 32
          %165 = vsyncadd %s158, %s164
          %s166 = smul.addr %s162, 16
          %s167 = scalar_lea.hbm %s1, %s166
          %s168 = sshll.u32 %s161, 4
          %s169 = int_to_ptr.vmem [resolvable:$true] %s168
          %174 = dma.hbm_to_vmem [thread:$0]  %s167, 32, %s169, %s158, 16, 16, 1
        $region24: #{tpu_custom_call.1} parent=15 // pred_fallthru
          _
      $region16: #{tpu_custom_call.1} parent=5 // pred_fallthru
        _
      %p175 = scmp.le.s32.totalorder 1, %s17
      %p176 = scmp.lt.s32.totalorder %s17, 3
      %p177 = pnand %p175, %p176
      %p178 = pneg %p177
      // Predicated region
      $region25: #{tpu_custom_call.1} parent=5 // pred_check
        _
      $region26: #{tpu_custom_call.1} parent=5 // pred_check_branch
        %180 = sbr.rel (%p177) target = $region28
      $region27: #{tpu_custom_call.1} parent=5 // pred_region
        %s181 = ssub.s32 %s17, 1
        %s182 = sand.u32 %s44, 1
        %s183 = scalar_lea.sflag [#allocation3], %s182
        %s184 = sand.u32 %s44, 1
        %s185 = smul.addr %s184, 32
        %s186 = scalar_lea.vmem [#allocation2], %s185
        // Predicated region
        $region29: #{tpu_custom_call.1} parent=27 // pred_check
          %p187 = pneg %p57
        $region30: #{tpu_custom_call.1} parent=27 // pred_check_branch
          %189 = sbr.rel (%p187) target = $region32
        $region31: #{tpu_custom_call.1} parent=27 // pred_region
          %190 = dma.done %s183, 512
        $region32: #{tpu_custom_call.1} parent=27 // pred_fallthru
          _
        %s191 = sand.u32 %s70, 1
        %s192 = scalar_lea.sflag [#allocation6], %s191
        %s193 = sand.u32 %s70, 1
        %s194 = smul.addr %s193, 2
        %s195 = scalar_lea.vmem [#allocation5], %s194
        // Predicated region
        $region33: #{tpu_custom_call.1} parent=27 // pred_check
          %p196 = pneg %p83
        $region34: #{tpu_custom_call.1} parent=27 // pred_check_branch
          %198 = sbr.rel (%p196) target = $region36
        $region35: #{tpu_custom_call.1} parent=27 // pred_region
          %199 = dma.done %s192, 32
        $region36: #{tpu_custom_call.1} parent=27 // pred_fallthru
          _
        %s200 = sand.u32 %s44, 1
        %s201 = scalar_lea.sflag [#allocation3], %s200
        %s202 = sand.u32 %s44, 1
        %s203 = smul.addr %s202, 32
        %s204 = scalar_lea.vmem [#allocation2], %s203
        %p205 = pneg %p57
        %p206 = pneg %p54
        %s207 = sand.u32 %s70, 1
        %s208 = scalar_lea.sflag [#allocation6], %s207
        %s209 = sand.u32 %s70, 1
        %s210 = smul.addr %s209, 2
        %s211 = scalar_lea.vmem [#allocation5], %s210
        %p212 = pneg %p83
        %p213 = pneg %p80
        %p214 = pneg %p111
        %p215 = pneg %p108
        %s216 = sand.u32 %s98, 1
        %s217 = scalar_lea.sflag [#allocation4], %s216
        %s218 = sand.u32 %s98, 1
        %s219 = smul.addr %s218, 32
        %s220 = scalar_lea.vmem [#allocation7], %s219
        %s221 = smul.u32 2, %s26
        %s222 = smul.u32 2, %s27
        %s223 = smul.u32 2, %s26
        %s224 = smul.u32 2, %s26
        %s225 = smul.u32 2, %s27
        %v226 = vld [vmem:[%s186] sm:$0xff]
        %v227 = vld [vmem:[%s186 + $0x8] sm:$0xff]
        %v228 = vld [vmem:[%s186 + $0x10] sm:$0xff]
        %v229 = vld [vmem:[%s186 + $0x18] sm:$0xff]
        %v230 = vld [vmem:[%s195] sm:$0x1]
        %v231 = vld [vmem:[%s195 + $0x1] sm:$0x1]
        %v234 = vlaneseq
        %v235 = vshrl.u32 %v234, 7
        %v236 = vsub.s32 0, %v235
        %v237 = vrot.slane %v230, %v236
        %v238 = vlaneseq
        %v239 = vshrl.u32 %v238, 7
        %v240 = vsub.s32 0, %v239
        %v241 = vrot.slane %v231, %v240
        %v244 = vadd.f32 %v226, %v237
        %v245 = vadd.f32 %v227, %v237
        %v246 = vadd.f32 %v228, %v241
        %v247 = vadd.f32 %v229, %v241
        %248 = vst [vmem:[%s220] sm:$0xff] %v244
        %249 = vst [vmem:[%s220 + $0x8] sm:$0xff] %v245
        %250 = vst [vmem:[%s220 + $0x10] sm:$0xff] %v246
        %251 = vst [vmem:[%s220 + $0x18] sm:$0xff] %v247
        %s252 = sand.u32 %s98, 1
        %s253 = scalar_lea.sflag [#allocation4], %s252
        %s254 = sand.u32 %s98, 1
        %s255 = smul.addr %s254, 32
        %s256 = scalar_lea.vmem [#allocation7], %s255
        // Predicated region
        $region37: #{tpu_custom_call.1} parent=27 // pred_check
          %p257 = pneg %p108
        $region38: #{tpu_custom_call.1} parent=27 // pred_check_branch
          %259 = sbr.rel (%p257) target = $region40
        $region39: #{tpu_custom_call.1} parent=27 // pred_region
          %s260 = smul.u32 2, %s26
          %s261 = smul.u32 2, %s27
          %s263 = ssub.s32 512, 512
          %264 = vsyncadd %s253, %s263
          %s265 = smul.addr %s260, 2
          %s266 = sadd.s32 %s261, %s265
          %s267 = smul.addr %s266, 128
          %s268 = scalar_lea.hbm %s2, %s267
          %s269 = sshll.u32 %s256, 4
          %s270 = int_to_ptr.vmem [resolvable:$true] %s269
          %275 = dma.vmem_to_hbm [thread:$0]  %s270, 512, %s268, %s253, 128, 128, 8
        $region40: #{tpu_custom_call.1} parent=27 // pred_fallthru
          _
      $region28: #{tpu_custom_call.1} parent=5 // pred_fallthru
        _
      %p276 = scmp.le.s32.totalorder 2, %s17
      // Predicated region
      $region41: #{tpu_custom_call.1} parent=5 // pred_check
        %p277 = pneg %p276
      $region42: #{tpu_custom_call.1} parent=5 // pred_check_branch
        %279 = sbr.rel (%p277) target = $region44
      $region43: #{tpu_custom_call.1} parent=5 // pred_region
        %s280 = ssub.s32 %s17, 2
        // Predicated region
        $region45: #{tpu_custom_call.1} parent=43 // pred_check
          %p281 = pneg %p114
        $region46: #{tpu_custom_call.1} parent=43 // pred_check_branch
          %283 = sbr.rel (%p281) target = $region48
        $region47: #{tpu_custom_call.1} parent=43 // pred_region
          %s284 = sand.u32 %s99, 1
          %s285 = scalar_lea.sflag [#allocation4], %s284
          %s286 = sand.u32 %s99, 1
          %s287 = smul.addr %s286, 32
          %s288 = scalar_lea.vmem [#allocation7], %s287
          %289 = dma.done %s285, 512
        $region48: #{tpu_custom_call.1} parent=43 // pred_fallthru
          _
      $region44: #{tpu_custom_call.1} parent=5 // pred_fallthru
        _
    $region6: #{tpu_custom_call.1} parent=1 // loop_footer
      %s21 = sadd.s32 1, %s17
    $region7: #{tpu_custom_call.1} parent=1 // loop_footer_branch
      %16 = sbr.rel target = $region3
    $region8: #{tpu_custom_call.1} parent=1 // loop_exit
      _
    %290 = vsyncpa [#allocation3], 1
    %s291 = scalar_lea.sflag [#allocation3], 1
    %292 = vsyncpa %s291, 1
    %293 = vsyncpa [#allocation6], 1
    %s294 = scalar_lea.sflag [#allocation6], 1
    %295 = vsyncpa %s294, 1
    %296 = vsyncpa [#allocation4], 1
    %s297 = scalar_lea.sflag [#allocation4], 1
    %298 = vsyncpa %s297, 1

</llo_original>
